<compile_context>
chip_gen: v5e
topology: v5e:2x2
jax: 0.10.0
libtpu: 0.0.40
codegen_flags: <defaults>
</compile_context>

<pallas_src>
import functools

import jax
import jax.numpy as jnp
from jax.experimental import pallas as pl
from jax.experimental.pallas import tpu as pltpu


def _matmul(a, w_ref, mxu_bf16):
    # MXU operand dtype: bf16 when forced (v5e) or when the weights are stored
    # in bf16; accumulation is always fp32 via preferred_element_type.
    dt = jnp.bfloat16 if mxu_bf16 else w_ref.dtype
    return jnp.dot(a.astype(dt), w_ref[...].astype(dt),
                   preferred_element_type=jnp.float32)


def _mlp_kernel(x_ref, w1_ref, b1_ref, w2_ref, b2_ref, w3_ref, b3_ref, o_ref,
                *, mxu_bf16):
    # fc1 + ReLU (bias/ReLU on the fp32 accumulator)
    h = _matmul(x_ref[...], w1_ref, mxu_bf16)
    h = jnp.maximum(h + b1_ref[...].astype(jnp.float32), 0.0)
    # fc2 + ReLU
    h = _matmul(h, w2_ref, mxu_bf16)
    h = jnp.maximum(h + b2_ref[...].astype(jnp.float32), 0.0)
    # fc3 (no activation)
    h = _matmul(h, w3_ref, mxu_bf16) + b3_ref[...].astype(jnp.float32)
    o_ref[...] = h.astype(o_ref.dtype)


def _round_up(n, m):
    return ((n + m - 1) // m) * m


@functools.partial(jax.jit, static_argnames=("block_b", "mxu_bf16"))
def simple_fcn_forward(x, params, *, block_b=2048, mxu_bf16=False):
    """x: (B, C, H, W) with C*H*W == 784 (or already (B, 784)), fp32 or bf16.
    params: (w1, b1, w2, b2, w3, b3) with w_i stored as (in, out).
    Returns (B, 10) fp32."""
    w1, b1, w2, b2, w3, b3 = params
    B = x.shape[0]
    x_flat = x.reshape(B, -1)                       # torch's x.view(x.size(0), -1)
    d_in = w1.shape[0]                              # 784
    d_out = w3.shape[1]                             # 10

    # Batch tile: sublane-aligned (multiple of 8), capped at block_b, and sized
    # so mid-sized batches still produce >= 2 grid steps (v7x megacore split).
    tb = min(block_b, max(8, _round_up(pl.cdiv(B, 2), 8)))
    n_tiles = pl.cdiv(B, tb)
    # NOTE: no jnp.pad of the ragged tail. The partial last block reads
    # undefined tail rows, but their outputs are never written past row B
    # (out_shape has exactly B rows), so they are harmless and cost no extra
    # HBM traffic.

    row_spec = lambda cols: pl.BlockSpec((tb, cols), lambda i: (i, 0))
    resident = lambda shape: pl.BlockSpec(shape, lambda i: (0, 0))  # constant block -> no re-DMA

    out = pl.pallas_call(
        functools.partial(_mlp_kernel, mxu_bf16=mxu_bf16),
        out_shape=jax.ShapeDtypeStruct((B, d_out), jnp.float32),
        grid=(n_tiles,),
        in_specs=[
            row_spec(d_in),                            # x: streamed, auto double-buffered
            resident(w1.shape), resident(b1.shape),    # weights/biases: VMEM-resident
            resident(w2.shape), resident(b2.shape),
            resident(w3.shape), resident(b3.shape),
        ],
        out_specs=row_spec(d_out),
        compiler_params=pltpu.CompilerParams(
            dimension_semantics=("parallel",),         # megacore split on v7x
            vmem_limit_bytes=48 * 1024 * 1024,         # ~16 MB used @ TB=2048 fp32
        ),
    )(x_flat, w1, b1, w2, b2, w3, b3)
    return out


def cast_params(params, dtype):
    """One-time storage cast (do this at data-load time, outside the hot loop).
    Biases may be cast too; the kernel up-casts them to fp32 before the add."""
    return tuple(p.astype(dtype) for p in params)


def init_params(key):
    """Deterministic init mimicking PyTorch's default Linear init:
    uniform(-1/sqrt(fan_in), 1/sqrt(fan_in)) for weight and bias.
    Weights stored as (in, out) for the kernel's row-major matmul."""
    dims = [(784, 128), (128, 64), (64, 10)]
    params = []
    for (fan_in, fan_out) in dims:
        key, kw, kb = jax.random.split(key, 3)
        bound = 1.0 / jnp.sqrt(fan_in)
        w = jax.random.uniform(kw, (fan_in, fan_out), jnp.float32, -bound, bound)
        b = jax.random.uniform(kb, (1, fan_out), jnp.float32, -bound, bound)
        params += [w, b]
    return tuple(params)


def reference_forward(x, params):
    w1, b1, w2, b2, w3, b3 = params
    h = x.reshape(x.shape[0], -1)
    h = jnp.maximum(h @ w1 + b1, 0.0)
    h = jnp.maximum(h @ w2 + b2, 0.0)
    return h @ w3 + b3


if __name__ == "__main__":
    key = jax.random.PRNGKey(0)
    key, kx = jax.random.split(key)
    # batch=2, MNIST-like NCHW input: (2, 1, 28, 28) -> flattens to 784 features
    x = jax.random.normal(kx, (2, 1, 28, 28), jnp.float32)
    params = init_params(key)

    ref = reference_forward(x, params)

    # 1) fp32 storage, fp32 MXU (default): matches the reference to fp32 rounding.
    out = jax.block_until_ready(simple_fcn_forward(x, params))
    assert out.shape == (2, 10)
    assert jnp.allclose(out, ref, atol=1e-4, rtol=1e-4)

    # 2) bf16 storage: halves the dominant HBM stream. Cast ONCE here, outside
    #    the jitted wrapper, so the kernel reads bf16 directly (no hidden
    #    fp32->bf16 HBM round trip per call).
    x_bf16 = x.astype(jnp.bfloat16)
    params_bf16 = cast_params(params, jnp.bfloat16)
    out_bf16 = jax.block_until_ready(simple_fcn_forward(x_bf16, params_bf16))
    assert out_bf16.shape == (2, 10)
    assert jnp.allclose(out_bf16, ref, atol=1e-1, rtol=1e-1)

    # 3) fp32 storage with bf16 MXU operands (recommended on v5e so the matmuls
    #    stay hidden under the DMA time instead of multi-pass fp32 MXU).
    out_v5e = jax.block_until_ready(simple_fcn_forward(x, params, mxu_bf16=True))
    assert out_v5e.shape == (2, 10)
    assert jnp.allclose(out_v5e, ref, atol=1e-1, rtol=1e-1)

    print("KERNEL_OK")
</pallas_src>

<mosaic_0001>
module attributes {stable_mosaic.version = 11 : i64} {
  func.func @_mlp_kernel(%arg0: i32, %arg1: memref<8x784xf32, #tpu.memory_space<vmem>>, %arg2: memref<784x128xf32, #tpu.memory_space<vmem>>, %arg3: memref<1x128xf32, #tpu.memory_space<vmem>>, %arg4: memref<128x64xf32, #tpu.memory_space<vmem>>, %arg5: memref<1x64xf32, #tpu.memory_space<vmem>>, %arg6: memref<64x10xf32, #tpu.memory_space<vmem>>, %arg7: memref<1x10xf32, #tpu.memory_space<vmem>>, %arg8: memref<8x10xf32, #tpu.memory_space<vmem>>) attributes {dimension_semantics = [#tpu.dimension_semantics<parallel>], iteration_bounds = array<i64: 1>, scalar_prefetch = 0 : i64, scratch_operands = 0 : i64, tpu.core_type = #tpu.core_type<tc>, window_params = [{transform_indices = @transform_0, window_bounds = array<i64: 8, 784>}, {pipeline_mode = #tpu.pipeline_mode<synchronous>, transform_indices = @transform_1, window_bounds = array<i64: 784, 128>}, {pipeline_mode = #tpu.pipeline_mode<synchronous>, transform_indices = @transform_2, window_bounds = array<i64: 1, 128>}, {pipeline_mode = #tpu.pipeline_mode<synchronous>, transform_indices = @transform_3, window_bounds = array<i64: 128, 64>}, {pipeline_mode = #tpu.pipeline_mode<synchronous>, transform_indices = @transform_4, window_bounds = array<i64: 1, 64>}, {pipeline_mode = #tpu.pipeline_mode<synchronous>, transform_indices = @transform_5, window_bounds = array<i64: 64, 10>}, {pipeline_mode = #tpu.pipeline_mode<synchronous>, transform_indices = @transform_6, window_bounds = array<i64: 1, 10>}, {transform_indices = @transform_7, window_bounds = array<i64: 8, 10>}]} {
    %c0 = arith.constant 0 : index
    %c0_0 = arith.constant 0 : index
    %0 = vector.load %arg1[%c0, %c0_0] : memref<8x784xf32, #tpu.memory_space<vmem>>, vector<8x784xf32>
    %c0_1 = arith.constant 0 : index
    %c0_2 = arith.constant 0 : index
    %1 = vector.load %arg2[%c0_1, %c0_2] : memref<784x128xf32, #tpu.memory_space<vmem>>, vector<784x128xf32>
    %cst = arith.constant dense<0.000000e+00> : vector<8x128xf32>
    %2 = tpu.matmul %0, %1, %cst {dimension_numbers = #tpu.dot_dimension_numbers<[1], [0], [0], [1], [0, 0, 1, 1], [], []>} : vector<8x784xf32>, vector<784x128xf32>, vector<8x128xf32> -> vector<8x128xf32>
    %c0_3 = arith.constant 0 : index
    %c0_4 = arith.constant 0 : index
    %3 = vector.load %arg3[%c0_3, %c0_4] : memref<1x128xf32, #tpu.memory_space<vmem>>, vector<1x128xf32>
    %4 = vector.broadcast %3 : vector<1x128xf32> to vector<8x128xf32>
    %5 = arith.addf %2, %4 : vector<8x128xf32>
    %cst_5 = arith.constant 0.000000e+00 : f32
    %6 = vector.broadcast %cst_5 : f32 to vector<8x128xf32>
    %7 = arith.maximumf %5, %6 : vector<8x128xf32>
    %c0_6 = arith.constant 0 : index
    %c0_7 = arith.constant 0 : index
    %8 = vector.load %arg4[%c0_6, %c0_7] : memref<128x64xf32, #tpu.memory_space<vmem>>, vector<128x64xf32>
    %cst_8 = arith.constant dense<0.000000e+00> : vector<8x64xf32>
    %9 = tpu.matmul %7, %8, %cst_8 {dimension_numbers = #tpu.dot_dimension_numbers<[1], [0], [0], [1], [0, 0, 1, 1], [], []>} : vector<8x128xf32>, vector<128x64xf32>, vector<8x64xf32> -> vector<8x64xf32>
    %c0_9 = arith.constant 0 : index
    %c0_10 = arith.constant 0 : index
    %10 = vector.load %arg5[%c0_9, %c0_10] : memref<1x64xf32, #tpu.memory_space<vmem>>, vector<1x64xf32>
    %11 = vector.broadcast %10 : vector<1x64xf32> to vector<8x64xf32>
    %12 = arith.addf %9, %11 : vector<8x64xf32>
    %cst_11 = arith.constant 0.000000e+00 : f32
    %13 = vector.broadcast %cst_11 : f32 to vector<8x64xf32>
    %14 = arith.maximumf %12, %13 : vector<8x64xf32>
    %c0_12 = arith.constant 0 : index
    %c0_13 = arith.constant 0 : index
    %15 = vector.load %arg6[%c0_12, %c0_13] : memref<64x10xf32, #tpu.memory_space<vmem>>, vector<64x10xf32>
    %cst_14 = arith.constant dense<0.000000e+00> : vector<8x10xf32>
    %16 = tpu.matmul %14, %15, %cst_14 {dimension_numbers = #tpu.dot_dimension_numbers<[1], [0], [0], [1], [0, 0, 1, 1], [], []>} : vector<8x64xf32>, vector<64x10xf32>, vector<8x10xf32> -> vector<8x10xf32>
    %c0_15 = arith.constant 0 : index
    %c0_16 = arith.constant 0 : index
    %17 = vector.load %arg7[%c0_15, %c0_16] : memref<1x10xf32, #tpu.memory_space<vmem>>, vector<1x10xf32>
    %18 = vector.broadcast %17 : vector<1x10xf32> to vector<8x10xf32>
    %19 = arith.addf %16, %18 : vector<8x10xf32>
    %c0_17 = arith.constant 0 : index
    %c0_18 = arith.constant 0 : index
    %20 = vector.load %arg8[%c0_17, %c0_18] : memref<8x10xf32, #tpu.memory_space<vmem>>, vector<8x10xf32>
    tpu.vector_store %arg8[%c0_17, %c0_18], %19 {strides = array<i32>} : memref<8x10xf32, #tpu.memory_space<vmem>>, vector<8x10xf32>,
    return
  }
  func.func @transform_0(%arg0: i32) -> (i32, i32) {
    %c0_i32 = arith.constant 0 : i32
    %c0_i32_0 = arith.constant 0 : i32
    return %arg0, %c0_i32 : i32, i32
  }
  func.func @transform_1(%arg0: i32) -> (i32, i32) {
    %c0_i32 = arith.constant 0 : i32
    %c0_i32_0 = arith.constant 0 : i32
    %c0_i32_1 = arith.constant 0 : i32
    return %c0_i32, %c0_i32_0 : i32, i32
  }
  func.func @transform_2(%arg0: i32) -> (i32, i32) {
    %c0_i32 = arith.constant 0 : i32
    %c0_i32_0 = arith.constant 0 : i32
    %c0_i32_1 = arith.constant 0 : i32
    return %c0_i32, %c0_i32_0 : i32, i32
  }
  func.func @transform_3(%arg0: i32) -> (i32, i32) {
    %c0_i32 = arith.constant 0 : i32
    %c0_i32_0 = arith.constant 0 : i32
    %c0_i32_1 = arith.constant 0 : i32
    return %c0_i32, %c0_i32_0 : i32, i32
  }
  func.func @transform_4(%arg0: i32) -> (i32, i32) {
    %c0_i32 = arith.constant 0 : i32
    %c0_i32_0 = arith.constant 0 : i32
    %c0_i32_1 = arith.constant 0 : i32
    return %c0_i32, %c0_i32_0 : i32, i32
  }
  func.func @transform_5(%arg0: i32) -> (i32, i32) {
    %c0_i32 = arith.constant 0 : i32
    %c0_i32_0 = arith.constant 0 : i32
    %c0_i32_1 = arith.constant 0 : i32
    return %c0_i32, %c0_i32_0 : i32, i32
  }
  func.func @transform_6(%arg0: i32) -> (i32, i32) {
    %c0_i32 = arith.constant 0 : i32
    %c0_i32_0 = arith.constant 0 : i32
    %c0_i32_1 = arith.constant 0 : i32
    return %c0_i32, %c0_i32_0 : i32, i32
  }
  func.func @transform_7(%arg0: i32) -> (i32, i32) {
    %c0_i32 = arith.constant 0 : i32
    %c0_i32_0 = arith.constant 0 : i32
    return %arg0, %c0_i32 : i32, i32
  }
}

</mosaic_0001>

<llo_original>
// kernel: simple_fcn_forward.1
$region0: #{simple_fcn_forward.1}
  #allocation0 [shape = 'u32[]', space=smem, size = 0x4, offset = 0x4, fixed_abs, tag = 'smem constant byte address 0x4 - core index']
  #allocation1 [shape = 'u32[72,128]{1,0:T(1,128)}', space=vmem, size = 0x9000, scoped, tag = 'internal scratch']
  %s0 = inlined_call_operand.vmem [shape: f32[2,784], index: 0, kind: input, shape index: {}]
  %s1 = inlined_call_operand.hbm [shape: f32[784,128], index: 1, kind: input, shape index: {}]
  %s2 = inlined_call_operand.vmem [shape: f32[1,128], index: 2, kind: input, shape index: {}]
  %s3 = inlined_call_operand.vmem [shape: f32[128,64], index: 3, kind: input, shape index: {}]
  %s4 = inlined_call_operand.vmem [shape: f32[1,64], index: 4, kind: input, shape index: {}]
  %s5 = inlined_call_operand.vmem [shape: f32[64,10], index: 5, kind: input, shape index: {}]
  %s6 = inlined_call_operand.vmem [shape: f32[1,10], index: 6, kind: input, shape index: {}]
  %s7 = inlined_call_operand.hbm [shape: f32[2,10], index: 7, kind: output, shape index: {}]
  %s8 = sld [smem:[#allocation0]]
  $region42: #{simple_fcn_forward.1} parent=0
    _
  %s10 = ssub.s32 1, %s8
  %s11 = scalar_select 0, %s10, %s8
  $region1: #{simple_fcn_forward.1} parent=0
    #allocation2 [shape = 'u8[401408]{0}', space=vmem, size = 0x62000, scoped, tag = 'input window, operand 1, single buffered']
    #allocation3 [shape = 's32[1]{0}', space=sflag, size = 0x4, scoped, tag = 'scoped memory for simple_fcn_forward.1']
    #allocation4 [shape = 's32[1]{0}', space=sflag, size = 0x4, scoped, tag = 'scoped memory for simple_fcn_forward.1']
    #allocation5 [shape = 'u8[4096]{0}', space=vmem, size = 0x1000, scoped, tag = 'output window, operand 0, single buffered']
    %12 = vsyncpa [#allocation3], 0
    %13 = vsyncpa [#allocation4], 0
    // Predicated region
    $region2: #{simple_fcn_forward.1} parent=1 // pred_check
      _
    $region3: #{simple_fcn_forward.1} parent=1 // pred_check_branch
      %15 = sbr.rel (0) target = $region5
    $region4: #{simple_fcn_forward.1} parent=1 // pred_region
      _
    $region5: #{simple_fcn_forward.1} parent=1 // pred_fallthru
      _
    // Predicated region
    $region6: #{simple_fcn_forward.1} parent=1 // pred_check
      _
    $region7: #{simple_fcn_forward.1} parent=1 // pred_check_branch
      %17 = sbr.rel (0) target = $region9
    $region8: #{simple_fcn_forward.1} parent=1 // pred_region
      %19 = vsyncadd [#allocation3], 0
      %s20 = sshll.u32 %s1, 4
      %s21 = int_to_ptr.hbm [resolvable:$true] %s20
      %s22 = sshll.u32 [#allocation2], 4
      %s23 = int_to_ptr.vmem [resolvable:$true] %s22
      %28 = dma.hbm_to_vmem [thread:$0]  %s21, 12544, %s23, [#allocation3], 128, 128, 8
    $region9: #{simple_fcn_forward.1} parent=1 // pred_fallthru
      _
    // Predicated region
    $region10: #{simple_fcn_forward.1} parent=1 // pred_check
      _
    $region11: #{simple_fcn_forward.1} parent=1 // pred_check_branch
      %30 = sbr.rel (0) target = $region13
    $region12: #{simple_fcn_forward.1} parent=1 // pred_region
      _
    $region13: #{simple_fcn_forward.1} parent=1 // pred_fallthru
      _
    // Predicated region
    $region14: #{simple_fcn_forward.1} parent=1 // pred_check
      _
    $region15: #{simple_fcn_forward.1} parent=1 // pred_check_branch
      %32 = sbr.rel (0) target = $region17
    $region16: #{simple_fcn_forward.1} parent=1 // pred_region
      _
    $region17: #{simple_fcn_forward.1} parent=1 // pred_fallthru
      _
    // Predicated region
    $region18: #{simple_fcn_forward.1} parent=1 // pred_check
      _
    $region19: #{simple_fcn_forward.1} parent=1 // pred_check_branch
      %34 = sbr.rel (0) target = $region21
    $region20: #{simple_fcn_forward.1} parent=1 // pred_region
      _
    $region21: #{simple_fcn_forward.1} parent=1 // pred_fallthru
      _
    // Predicated region
    $region22: #{simple_fcn_forward.1} parent=1 // pred_check
      _
    $region23: #{simple_fcn_forward.1} parent=1 // pred_check_branch
      %36 = sbr.rel (0) target = $region25
    $region24: #{simple_fcn_forward.1} parent=1 // pred_region
      _
    $region25: #{simple_fcn_forward.1} parent=1 // pred_fallthru
      _
    // Predicated region
    $region26: #{simple_fcn_forward.1} parent=1 // pred_check
      _
    $region27: #{simple_fcn_forward.1} parent=1 // pred_check_branch
      %38 = sbr.rel (0) target = $region29
    $region28: #{simple_fcn_forward.1} parent=1 // pred_region
      _
    $region29: #{simple_fcn_forward.1} parent=1 // pred_fallthru
      _
    // Predicated region
    $region30: #{simple_fcn_forward.1} parent=1 // pred_check
      _
    $region31: #{simple_fcn_forward.1} parent=1 // pred_check_branch
      %40 = sbr.rel (0) target = $region33
    $region32: #{simple_fcn_forward.1} parent=1 // pred_region
      %42 = dma.done [#allocation3], 12544
    $region33: #{simple_fcn_forward.1} parent=1 // pred_fallthru
      _
    %v43 = vld [vmem:[%s0] sm:$0xff]
    %v44 = vld [vmem:[%s0 + $0x8] sm:$0x3f]
    %v45 = vld [vmem:[%s0 + $0xe] sm:$0xff]
    %v46 = vld [vmem:[%s0 + $0x16] sm:$0x3f]
    %v47 = vld [vmem:[%s0 + $0x1c] sm:$0xff]
    %v48 = vld [vmem:[%s0 + $0x24] sm:$0x3f]
    %v49 = vld [vmem:[%s0 + $0x2a] sm:$0xff]
    %v50 = vld [vmem:[%s0 + $0x32] sm:$0x3f]
    %v51 = vld [vmem:[#allocation2] sm:$0xff]
    %v52 = vld [vmem:[#allocation2 + $0x8] sm:$0xff]
    %v53 = vld [vmem:[#allocation2 + $0x10] sm:$0xff]
    %v54 = vld [vmem:[#allocation2 + $0x18] sm:$0xff]
    %v55 = vld [vmem:[#allocation2 + $0x20] sm:$0xff]
    %v56 = vld [vmem:[#allocation2 + $0x28] sm:$0xff]
    %v57 = vld [vmem:[#allocation2 + $0x30] sm:$0xff]
    %v58 = vld [vmem:[#allocation2 + $0x38] sm:$0xff]
    %v59 = vld [vmem:[#allocation2 + $0x40] sm:$0xff]
    %v60 = vld [vmem:[#allocation2 + $0x48] sm:$0xff]
    %v61 = vld [vmem:[#allocation2 + $0x50] sm:$0xff]
    %v62 = vld [vmem:[#allocation2 + $0x58] sm:$0xff]
    %v63 = vld [vmem:[#allocation2 + $0x60] sm:$0xff]
    %v64 = vld [vmem:[#allocation2 + $0x68] sm:$0xff]
    %v65 = vld [vmem:[#allocation2 + $0x70] sm:$0xff]
    %v66 = vld [vmem:[#allocation2 + $0x78] sm:$0xff]
    %v67 = vld [vmem:[#allocation2 + $0x80] sm:$0xff]
    %v68 = vld [vmem:[#allocation2 + $0x88] sm:$0xff]
    %v69 = vld [vmem:[#allocation2 + $0x90] sm:$0xff]
    %v70 = vld [vmem:[#allocation2 + $0x98] sm:$0xff]
    %v71 = vld [vmem:[#allocation2 + $0xa0] sm:$0xff]
    %v72 = vld [vmem:[#allocation2 + $0xa8] sm:$0xff]
    %v73 = vld [vmem:[#allocation2 + $0xb0] sm:$0xff]
    %v74 = vld [vmem:[#allocation2 + $0xb8] sm:$0xff]
    %v75 = vld [vmem:[#allocation2 + $0xc0] sm:$0xff]
    %v76 = vld [vmem:[#allocation2 + $0xc8] sm:$0xff]
    %v77 = vld [vmem:[#allocation2 + $0xd0] sm:$0xff]
    %v78 = vld [vmem:[#allocation2 + $0xd8] sm:$0xff]
    %v79 = vld [vmem:[#allocation2 + $0xe0] sm:$0xff]
    %v80 = vld [vmem:[#allocation2 + $0xe8] sm:$0xff]
    %v81 = vld [vmem:[#allocation2 + $0xf0] sm:$0xff]
    %v82 = vld [vmem:[#allocation2 + $0xf8] sm:$0xff]
    %v83 = vld [vmem:[#allocation2 + $0x100] sm:$0xff]
    %v84 = vld [vmem:[#allocation2 + $0x108] sm:$0xff]
    %v85 = vld [vmem:[#allocation2 + $0x110] sm:$0xff]
    %v86 = vld [vmem:[#allocation2 + $0x118] sm:$0xff]
    %v87 = vld [vmem:[#allocation2 + $0x120] sm:$0xff]
    %v88 = vld [vmem:[#allocation2 + $0x128] sm:$0xff]
    %v89 = vld [vmem:[#allocation2 + $0x130] sm:$0xff]
    %v90 = vld [vmem:[#allocation2 + $0x138] sm:$0xff]
    %v91 = vld [vmem:[#allocation2 + $0x140] sm:$0xff]
    %v92 = vld [vmem:[#allocation2 + $0x148] sm:$0xff]
    %v93 = vld [vmem:[#allocation2 + $0x150] sm:$0xff]
    %v94 = vld [vmem:[#allocation2 + $0x158] sm:$0xff]
    %v95 = vld [vmem:[#allocation2 + $0x160] sm:$0xff]
    %v96 = vld [vmem:[#allocation2 + $0x168] sm:$0xff]
    %v97 = vld [vmem:[#allocation2 + $0x170] sm:$0xff]
    %v98 = vld [vmem:[#allocation2 + $0x178] sm:$0xff]
    %v99 = vld [vmem:[#allocation2 + $0x180] sm:$0xff]
    %v100 = vld [vmem:[#allocation2 + $0x188] sm:$0xff]
    %v101 = vld [vmem:[#allocation2 + $0x190] sm:$0xff]
    %v102 = vld [vmem:[#allocation2 + $0x198] sm:$0xff]
    %v103 = vld [vmem:[#allocation2 + $0x1a0] sm:$0xff]
    %v104 = vld [vmem:[#allocation2 + $0x1a8] sm:$0xff]
    %v105 = vld [vmem:[#allocation2 + $0x1b0] sm:$0xff]
    %v106 = vld [vmem:[#allocation2 + $0x1b8] sm:$0xff]
    %v107 = vld [vmem:[#allocation2 + $0x1c0] sm:$0xff]
    %v108 = vld [vmem:[#allocation2 + $0x1c8] sm:$0xff]
    %v109 = vld [vmem:[#allocation2 + $0x1d0] sm:$0xff]
    %v110 = vld [vmem:[#allocation2 + $0x1d8] sm:$0xff]
    %v111 = vld [vmem:[#allocation2 + $0x1e0] sm:$0xff]
    %v112 = vld [vmem:[#allocation2 + $0x1e8] sm:$0xff]
    %v113 = vld [vmem:[#allocation2 + $0x1f0] sm:$0xff]
    %v114 = vld [vmem:[#allocation2 + $0x1f8] sm:$0xff]
    %v115 = vld [vmem:[#allocation2 + $0x200] sm:$0xff]
    %v116 = vld [vmem:[#allocation2 + $0x208] sm:$0xff]
    %v117 = vld [vmem:[#allocation2 + $0x210] sm:$0xff]
    %v118 = vld [vmem:[#allocation2 + $0x218] sm:$0xff]
    %v119 = vld [vmem:[#allocation2 + $0x220] sm:$0xff]
    %v120 = vld [vmem:[#allocation2 + $0x228] sm:$0xff]
    %v121 = vld [vmem:[#allocation2 + $0x230] sm:$0xff]
    %v122 = vld [vmem:[#allocation2 + $0x238] sm:$0xff]
    %v123 = vld [vmem:[#allocation2 + $0x240] sm:$0xff]
    %v124 = vld [vmem:[#allocation2 + $0x248] sm:$0xff]
    %v125 = vld [vmem:[#allocation2 + $0x250] sm:$0xff]
    %v126 = vld [vmem:[#allocation2 + $0x258] sm:$0xff]
    %v127 = vld [vmem:[#allocation2 + $0x260] sm:$0xff]
    %v128 = vld [vmem:[#allocation2 + $0x268] sm:$0xff]
    %v129 = vld [vmem:[#allocation2 + $0x270] sm:$0xff]
    %v130 = vld [vmem:[#allocation2 + $0x278] sm:$0xff]
    %v131 = vld [vmem:[#allocation2 + $0x280] sm:$0xff]
    %v132 = vld [vmem:[#allocation2 + $0x288] sm:$0xff]
    %v133 = vld [vmem:[#allocation2 + $0x290] sm:$0xff]
    %v134 = vld [vmem:[#allocation2 + $0x298] sm:$0xff]
    %v135 = vld [vmem:[#allocation2 + $0x2a0] sm:$0xff]
    %v136 = vld [vmem:[#allocation2 + $0x2a8] sm:$0xff]
    %v137 = vld [vmem:[#allocation2 + $0x2b0] sm:$0xff]
    %v138 = vld [vmem:[#allocation2 + $0x2b8] sm:$0xff]
    %v139 = vld [vmem:[#allocation2 + $0x2c0] sm:$0xff]
    %v140 = vld [vmem:[#allocation2 + $0x2c8] sm:$0xff]
    %v141 = vld [vmem:[#allocation2 + $0x2d0] sm:$0xff]
    %v142 = vld [vmem:[#allocation2 + $0x2d8] sm:$0xff]
    %v143 = vld [vmem:[#allocation2 + $0x2e0] sm:$0xff]
    %v144 = vld [vmem:[#allocation2 + $0x2e8] sm:$0xff]
    %v145 = vld [vmem:[#allocation2 + $0x2f0] sm:$0xff]
    %v146 = vld [vmem:[#allocation2 + $0x2f8] sm:$0xff]
    %v147 = vld [vmem:[#allocation2 + $0x300] sm:$0xff]
    %v148 = vld [vmem:[#allocation2 + $0x308] sm:$0xff]
    %v149 = vld [vmem:[%s2] sm:$0x1]
    %v151 = vperm.slane %v149, 0
    %161 = vst [vmem:[#allocation1] ss:$4 sm:$0xff] %v43
    %s162 = scalar_lea.vmem [#allocation1], 1
    %163 = vst [vmem:[%s162] ss:$4 sm:$0xff] %v45
    %s164 = scalar_lea.vmem [#allocation1], 2
    %165 = vst [vmem:[%s164] ss:$4 sm:$0xff] %v47
    %s166 = scalar_lea.vmem [#allocation1], 3
    %167 = vst [vmem:[%s166] ss:$4 sm:$0xff] %v49
    %s168 = scalar_lea.vmem [#allocation1], 32
    %169 = vst [vmem:[%s168] ss:$4 sm:$0xff] %v44
    %s170 = scalar_lea.vmem [#allocation1], 33
    %171 = vst [vmem:[%s170] ss:$4 sm:$0xff] %v46
    %s172 = scalar_lea.vmem [#allocation1], 34
    %173 = vst [vmem:[%s172] ss:$4 sm:$0xff] %v48
    %s174 = scalar_lea.vmem [#allocation1], 35
    %175 = vst [vmem:[%s174] ss:$4 sm:$0xff] %v50
    %v176 = vld.sshfl [vmem:[#allocation1] sm:$0xff pattern:$0x73625140]
    %v177 = vld.sshfl [vmem:[#allocation1 + $0x8] sm:$0xff pattern:$0x73625140]
    %v178 = vld.sshfl [vmem:[#allocation1 + $0x10] sm:$0xff pattern:$0x73625140]
    %v179 = vld.sshfl [vmem:[#allocation1 + $0x18] sm:$0xff pattern:$0x73625140]
    %v180 = vld.sshfl [vmem:[#allocation1 + $0x20] sm:$0xff pattern:$0x73625140]
    %v181 = vld.sshfl [vmem:[#allocation1 + $0x28] sm:$0xff pattern:$0x73625140]
    %v182 = vld.sshfl [vmem:[#allocation1 + $0x30] sm:$0xff pattern:$0x73625140]
    %vm189 = vcmask 130048
    %v190 = vsel %vm189, %v182, 0
    %192 = vmatpush.msra.mxu0 %v66
    %193 = vmatpush.msra.mxu0 %v65
    %194 = vmatpush.msra.mxu0 %v64
    %195 = vmatpush.msra.mxu0 %v63
    %196 = vmatpush.msra.mxu0 %v62
    %197 = vmatpush.msra.mxu0 %v61
    %198 = vmatpush.msra.mxu0 %v60
    %199 = vmatpush.msra.mxu0 %v59
    %200 = vmatpush.msra.mxu0 %v58
    %201 = vmatpush.msra.mxu0 %v57
    %202 = vmatpush.msra.mxu0 %v56
    %203 = vmatpush.msra.mxu0 %v55
    %204 = vmatpush.msra.mxu0 %v54
    %205 = vmatpush.msra.mxu0 %v53
    %206 = vmatpush.msra.mxu0 %v52
    %207 = vmatpush.msra.mxu0 %v51
    %208 = vmatmul.f32.gmra.mxu0 %v176
    %v209 = vpop.f32.mrf.mxu0
    %v210 = vadd.f32 %v151, %v209
    %211 = vdwg.mxu0
    %212 = vmatpush.msra.mxu0 %v82
    %213 = vmatpush.msra.mxu0 %v81
    %214 = vmatpush.msra.mxu0 %v80
    %215 = vmatpush.msra.mxu0 %v79
    %216 = vmatpush.msra.mxu0 %v78
    %217 = vmatpush.msra.mxu0 %v77
    %218 = vmatpush.msra.mxu0 %v76
    %219 = vmatpush.msra.mxu0 %v75
    %220 = vmatpush.msra.mxu0 %v74
    %221 = vmatpush.msra.mxu0 %v73
    %222 = vmatpush.msra.mxu0 %v72
    %223 = vmatpush.msra.mxu0 %v71
    %224 = vmatpush.msra.mxu0 %v70
    %225 = vmatpush.msra.mxu0 %v69
    %226 = vmatpush.msra.mxu0 %v68
    %227 = vmatpush.msra.mxu0 %v67
    %228 = vmatmul.f32.gmra.mxu0 %v177
    %v229 = vpop.f32.mrf.mxu0
    %v230 = vadd.f32 %v210, %v229
    %231 = vdwg.mxu0
    %232 = vmatpush.msra.mxu0 %v98
    %233 = vmatpush.msra.mxu0 %v97
    %234 = vmatpush.msra.mxu0 %v96
    %235 = vmatpush.msra.mxu0 %v95
    %236 = vmatpush.msra.mxu0 %v94
    %237 = vmatpush.msra.mxu0 %v93
    %238 = vmatpush.msra.mxu0 %v92
    %239 = vmatpush.msra.mxu0 %v91
    %240 = vmatpush.msra.mxu0 %v90
    %241 = vmatpush.msra.mxu0 %v89
    %242 = vmatpush.msra.mxu0 %v88
    %243 = vmatpush.msra.mxu0 %v87
    %244 = vmatpush.msra.mxu0 %v86
    %245 = vmatpush.msra.mxu0 %v85
    %246 = vmatpush.msra.mxu0 %v84
    %247 = vmatpush.msra.mxu0 %v83
    %248 = vmatmul.f32.gmra.mxu0 %v178
    %v249 = vpop.f32.mrf.mxu0
    %v250 = vadd.f32 %v230, %v249
    %251 = vdwg.mxu0
    %252 = vmatpush.msra.mxu0 %v114
    %253 = vmatpush.msra.mxu0 %v113
    %254 = vmatpush.msra.mxu0 %v112
    %255 = vmatpush.msra.mxu0 %v111
    %256 = vmatpush.msra.mxu0 %v110
    %257 = vmatpush.msra.mxu0 %v109
    %258 = vmatpush.msra.mxu0 %v108
    %259 = vmatpush.msra.mxu0 %v107
    %260 = vmatpush.msra.mxu0 %v106
    %261 = vmatpush.msra.mxu0 %v105
    %262 = vmatpush.msra.mxu0 %v104
    %263 = vmatpush.msra.mxu0 %v103
    %264 = vmatpush.msra.mxu0 %v102
    %265 = vmatpush.msra.mxu0 %v101
    %266 = vmatpush.msra.mxu0 %v100
    %267 = vmatpush.msra.mxu0 %v99
    %268 = vmatmul.f32.gmra.mxu0 %v179
    %v269 = vpop.f32.mrf.mxu0
    %v270 = vadd.f32 %v250, %v269
    %271 = vdwg.mxu0
    %272 = vmatpush.msra.mxu0 %v130
    %273 = vmatpush.msra.mxu0 %v129
    %274 = vmatpush.msra.mxu0 %v128
    %275 = vmatpush.msra.mxu0 %v127
    %276 = vmatpush.msra.mxu0 %v126
    %277 = vmatpush.msra.mxu0 %v125
    %278 = vmatpush.msra.mxu0 %v124
    %279 = vmatpush.msra.mxu0 %v123
    %280 = vmatpush.msra.mxu0 %v122
    %281 = vmatpush.msra.mxu0 %v121
    %282 = vmatpush.msra.mxu0 %v120
    %283 = vmatpush.msra.mxu0 %v119
    %284 = vmatpush.msra.mxu0 %v118
    %285 = vmatpush.msra.mxu0 %v117
    %286 = vmatpush.msra.mxu0 %v116
    %287 = vmatpush.msra.mxu0 %v115
    %288 = vmatmul.f32.gmra.mxu0 %v180
    %v289 = vpop.f32.mrf.mxu0
    %v290 = vadd.f32 %v270, %v289
    %291 = vdwg.mxu0
    %292 = vmatpush.msra.mxu0 %v146
    %293 = vmatpush.msra.mxu0 %v145
    %294 = vmatpush.msra.mxu0 %v144
    %295 = vmatpush.msra.mxu0 %v143
    %296 = vmatpush.msra.mxu0 %v142
    %297 = vmatpush.msra.mxu0 %v141
    %298 = vmatpush.msra.mxu0 %v140
    %299 = vmatpush.msra.mxu0 %v139
    %300 = vmatpush.msra.mxu0 %v138
    %301 = vmatpush.msra.mxu0 %v137
    %302 = vmatpush.msra.mxu0 %v136
    %303 = vmatpush.msra.mxu0 %v135
    %304 = vmatpush.msra.mxu0 %v134
    %305 = vmatpush.msra.mxu0 %v133
    %306 = vmatpush.msra.mxu0 %v132
    %307 = vmatpush.msra.mxu0 %v131
    %308 = vmatmul.f32.gmra.mxu0 %v181
    %v309 = vpop.f32.mrf.mxu0
    %v310 = vadd.f32 %v290, %v309
    %311 = vdwg.mxu0
    %312 = vmatpush.msra.mxu0 0.0
    %313 = vmatpush.msra.mxu0 0.0
    %314 = vmatpush.msra.mxu0 0.0
    %315 = vmatpush.msra.mxu0 0.0
    %316 = vmatpush.msra.mxu0 0.0
    %317 = vmatpush.msra.mxu0 0.0
    %318 = vmatpush.msra.mxu0 0.0
    %319 = vmatpush.msra.mxu0 0.0
    %320 = vmatpush.msra.mxu0 0.0
    %321 = vmatpush.msra.mxu0 0.0
    %322 = vmatpush.msra.mxu0 0.0
    %323 = vmatpush.msra.mxu0 0.0
    %324 = vmatpush.msra.mxu0 0.0
    %325 = vmatpush.msra.mxu0 0.0
    %326 = vmatpush.msra.mxu0 %v148
    %327 = vmatpush.msra.mxu0 %v147
    %328 = vmatmul.f32.gmra.mxu0 %v190
    %v329 = vpop.f32.mrf.mxu0
    %v330 = vadd.f32 %v310, %v329
    %331 = vdwg.mxu0
    %v332 = vmax.f32 %v330, 0.0
    %v333 = vld [vmem:[%s3] sm:$0xff]
    %v334 = vld [vmem:[%s3 + $0x8] sm:$0xff]
    %v335 = vld [vmem:[%s3 + $0x10] sm:$0xff]
    %v336 = vld [vmem:[%s3 + $0x18] sm:$0xff]
    %v337 = vld [vmem:[%s3 + $0x20] sm:$0xff]
    %v338 = vld [vmem:[%s3 + $0x28] sm:$0xff]
    %v339 = vld [vmem:[%s3 + $0x30] sm:$0xff]
    %v340 = vld [vmem:[%s3 + $0x38] sm:$0xff]
    %v341 = vld [vmem:[%s3 + $0x40] sm:$0xff]
    %v342 = vld [vmem:[%s3 + $0x48] sm:$0xff]
    %v343 = vld [vmem:[%s3 + $0x50] sm:$0xff]
    %v344 = vld [vmem:[%s3 + $0x58] sm:$0xff]
    %v345 = vld [vmem:[%s3 + $0x60] sm:$0xff]
    %v346 = vld [vmem:[%s3 + $0x68] sm:$0xff]
    %v347 = vld [vmem:[%s3 + $0x70] sm:$0xff]
    %v348 = vld [vmem:[%s3 + $0x78] sm:$0xff]
    %v349 = vld [vmem:[%s4] sm:$0x1]
    %v351 = vperm.slane %v349, 0
    %353 = vmatpush.msra.mxu0 %v348
    %354 = vmatpush.msra.mxu0 %v347
    %355 = vmatpush.msra.mxu0 %v346
    %356 = vmatpush.msra.mxu0 %v345
    %357 = vmatpush.msra.mxu0 %v344
    %358 = vmatpush.msra.mxu0 %v343
    %359 = vmatpush.msra.mxu0 %v342
    %360 = vmatpush.msra.mxu0 %v341
    %361 = vmatpush.msra.mxu0 %v340
    %362 = vmatpush.msra.mxu0 %v339
    %363 = vmatpush.msra.mxu0 %v338
    %364 = vmatpush.msra.mxu0 %v337
    %365 = vmatpush.msra.mxu0 %v336
    %366 = vmatpush.msra.mxu0 %v335
    %367 = vmatpush.msra.mxu0 %v334
    %368 = vmatpush.msra.mxu0 %v333
    %369 = vmatmul.f32.gmra.mxu0 %v332
    %v370 = vpop.f32.mrf.mxu0
    %v371 = vadd.f32 %v351, %v370
    %372 = vdwg.mxu0
    %v373 = vmax.f32 %v371, 0.0
    %v374 = vld [vmem:[%s5] sm:$0xff]
    %v375 = vld [vmem:[%s5 + $0x8] sm:$0xff]
    %v376 = vld [vmem:[%s5 + $0x10] sm:$0xff]
    %v377 = vld [vmem:[%s5 + $0x18] sm:$0xff]
    %v378 = vld [vmem:[%s5 + $0x20] sm:$0xff]
    %v379 = vld [vmem:[%s5 + $0x28] sm:$0xff]
    %v380 = vld [vmem:[%s5 + $0x30] sm:$0xff]
    %v381 = vld [vmem:[%s5 + $0x38] sm:$0xff]
    %v382 = vld [vmem:[%s6] sm:$0x1]
    %v384 = vperm.slane %v382, 0
    %vm386 = vcmask 523264
    %v388 = vsel %vm386, %v373, 0
    %390 = vmatpush.msra.mxu0 0.0
    %391 = vmatpush.msra.mxu0 0.0
    %392 = vmatpush.msra.mxu0 0.0
    %393 = vmatpush.msra.mxu0 0.0
    %394 = vmatpush.msra.mxu0 0.0
    %395 = vmatpush.msra.mxu0 0.0
    %396 = vmatpush.msra.mxu0 0.0
    %397 = vmatpush.msra.mxu0 0.0
    %398 = vmatpush.msra.mxu0 %v381
    %399 = vmatpush.msra.mxu0 %v380
    %400 = vmatpush.msra.mxu0 %v379
    %401 = vmatpush.msra.mxu0 %v378
    %402 = vmatpush.msra.mxu0 %v377
    %403 = vmatpush.msra.mxu0 %v376
    %404 = vmatpush.msra.mxu0 %v375
    %405 = vmatpush.msra.mxu0 %v374
    %406 = vmatmul.f32.gmra.mxu0 %v388
    %v407 = vpop.f32.mrf.mxu0
    %v408 = vadd.f32 %v384, %v407
    %409 = vdwg.mxu0
    %vm410 = vcmask 80896
    %411 = vst.msk [vmem:[#allocation5] sm:$0xff] %vm410, %v408
    // Predicated region
    $region34: #{simple_fcn_forward.1} parent=1 // pred_check
      _
    $region35: #{simple_fcn_forward.1} parent=1 // pred_check_branch
      %413 = sbr.rel (0) target = $region37
    $region36: #{simple_fcn_forward.1} parent=1 // pred_region
      %415 = vsyncadd [#allocation4], 96
      %s416 = sshll.u32 [#allocation5], 4
      %s417 = int_to_ptr.vmem [resolvable:$true] %s416
      %s418 = sshll.u32 %s7, 4
      %s419 = int_to_ptr.hbm [resolvable:$true] %s418
      %424 = dma.vmem_to_hbm [thread:$0]  %s417, 32, %s419, [#allocation4], 32, 32, 2
    $region37: #{simple_fcn_forward.1} parent=1 // pred_fallthru
      _
    // Predicated region
    $region38: #{simple_fcn_forward.1} parent=1 // pred_check
      _
    $region39: #{simple_fcn_forward.1} parent=1 // pred_check_branch
      %426 = sbr.rel (0) target = $region41
    $region40: #{simple_fcn_forward.1} parent=1 // pred_region
      %428 = dma.done [#allocation4], 128
    $region41: #{simple_fcn_forward.1} parent=1 // pred_fallthru
      _
    %429 = vsyncpa [#allocation3], 1
    %430 = vsyncpa [#allocation4], 1

</llo_original>
